<compile_context>
chip_gen: v5e
topology: v5e:2x2
jax: 0.10.0
libtpu: 0.0.40
codegen_flags: <defaults>
</compile_context>

<pallas_src>
import functools

import jax
import jax.numpy as jnp
from jax.experimental import pallas as pl
from jax.experimental.pallas import tpu as pltpu


# --------------------------------------------------------------------------
# Hardware query (guarded: falls back to conservative v7x-like numbers).
# --------------------------------------------------------------------------
def _tpu_query():
    cores = 1
    vmem_capacity = 64 * 1024 * 1024  # conservative (v7x per-TC VMEM)
    try:
        info = pltpu.get_tpu_info()
    except Exception:
        return cores, vmem_capacity
    vmem_capacity = int(getattr(info, "vmem_capacity_bytes", vmem_capacity)
                        or vmem_capacity)
    for name in ("num_cores", "core_count", "num_tensorcores",
                 "tensorcore_count", "cores_per_chip"):
        val = getattr(info, name, None)
        if val:
            cores = int(val)
            break
    return max(1, cores), vmem_capacity


def _pow2_floor(n):
    p = 1
    while p * 2 <= n:
        p *= 2
    return p


# --------------------------------------------------------------------------
# Kernel
# --------------------------------------------------------------------------
def _tile_partial(p_ref, l_ref, tile_b, rows_left=None):
    """(p-l)^2 for one tile, folded over sublane groups down to (8, C).

    Pure VPU work: upcast, sub, square, optional select, log2(tile_b/8)
    levels of vreg adds. No XLU reduce, no weight multiply.
    """
    p = p_ref[...].astype(jnp.float32)
    l = l_ref[...].astype(jnp.float32)
    d = p - l
    sq = d * d                                           # (tile_b, C)

    if rows_left is not None:
        # Zero rows past the true batch size (NaN-safe select, not multiply).
        row_ids = jax.lax.broadcasted_iota(jnp.int32, sq.shape, 0)
        sq = jnp.where(row_ids < rows_left, sq, 0.0)

    # Halving tree over the sublane-major axis (tile_b is a power of two, >=8).
    x = sq
    r = tile_b
    while r > 8:
        r //= 2
        x = x[:r, :] + x[r:, :]                          # sublane-aligned slices
    return x                                             # (8, C) f32


def _wmse_kernel(p_ref, l_ref, out_ref, *, batch, tile_b, tiles_per_shard,
                 needs_mask):
    i = pl.program_id(0)   # shard axis (TensorCores on v7x)
    j = pl.program_id(1)   # batch-tile axis (reduction)

    @pl.when(j == 0)
    def _():
        out_ref[...] = jnp.zeros_like(out_ref)

    if needs_mask:
        t = i * tiles_per_shard + j          # logical tile index (unclamped)
        rows_left = batch - t * tile_b       # <= 0 for fully out-of-range tiles
        is_full = rows_left >= tile_b

        # Only the last / overhanging tiles pay for the mask; full tiles take
        # the unmasked path (the pl.when bodies are mutually exclusive at
        # runtime, so the per-element work is done exactly once).
        @pl.when(is_full)
        def _():
            out_ref[...] += _tile_partial(p_ref, l_ref, tile_b)

        @pl.when(jnp.logical_not(is_full))
        def _():
            out_ref[...] += _tile_partial(p_ref, l_ref, tile_b, rows_left)
    else:
        out_ref[...] += _tile_partial(p_ref, l_ref, tile_b)


# --------------------------------------------------------------------------
# Wrapper
# --------------------------------------------------------------------------
def weighted_mse(weight, predict, label, *, tile_b=None, n_shards=None,
                 input_vmem_budget_bytes=48 * 1024 * 1024):
    """weight: (C,) or (1, C); predict/label: (B, C) any float dtype -> f32 scalar."""
    weight = jnp.asarray(weight, jnp.float32).reshape(1, -1)
    predict = jnp.asarray(predict)            # keep native dtype (no HBM upcast)
    label = jnp.asarray(label)
    B, C = predict.shape
    assert weight.shape == (1, C) and label.shape == (B, C)
    assert predict.dtype == label.dtype

    cores, vmem_capacity = _tpu_query()

    itemsize = jnp.dtype(predict.dtype).itemsize
    c_pad = ((C + 127) // 128) * 128          # lane padding in VMEM
    b_ceil = ((B + 7) // 8) * 8
    # sublane packing: 2-byte dtypes want >=16-row blocks, 1-byte >=32.
    min_rows = {4: 8, 2: 16, 1: 32}.get(itemsize, 8)

    # Per-row VMEM cost: 2 inputs x 2 pipeline buffers (native dtype) plus a
    # conservative allowance for in-kernel f32 temporaries (upcasts, squared
    # diff, mask, fold intermediates).
    bytes_per_row = c_pad * (4 * itemsize + 24)

    if tile_b is None:
        budget = min(int(input_vmem_budget_bytes), int(0.70 * vmem_capacity))
        cap = max(min_rows, budget // bytes_per_row)
        tile_b = min(2048, cap, pl.next_power_of_2(b_ceil))
    tile_b = max(min_rows, _pow2_floor(int(tile_b)))

    n_tiles = pl.cdiv(B, tile_b)
    if n_shards is None:
        n_shards = cores                      # 1 on v5e/v6e, 2 on v7x
    n_shards = max(1, min(int(n_shards), n_tiles))
    tiles_per_shard = pl.cdiv(n_tiles, n_shards)
    needs_mask = (n_shards * tiles_per_shard * tile_b) != B

    def data_map(i, j):
        # Clamp so overhanging shard steps re-read a valid block (fully masked).
        return (jnp.minimum(i * tiles_per_shard + j, n_tiles - 1), 0)

    kernel = functools.partial(
        _wmse_kernel, batch=B, tile_b=tile_b,
        tiles_per_shard=tiles_per_shard, needs_mask=needs_mask)

    # VMEM limit: what we actually need (+ slop), never more than ~85% of the
    # physical per-core capacity (v7x only has 64 MiB/TC).
    vmem_needed = tile_b * bytes_per_row + (4 << 20)
    vmem_limit = int(min(int(0.85 * vmem_capacity),
                         max(vmem_needed, 32 * 1024 * 1024)))

    # Use CORE_PARALLEL for the shard axis only when it actually maps onto the
    # detected TensorCores (v7x); otherwise keep plain "parallel".
    if n_shards > 1 and n_shards == cores:
        dim_sem = (pltpu.CORE_PARALLEL, pltpu.ARBITRARY)
    else:
        dim_sem = ("parallel", "arbitrary")

    partials = pl.pallas_call(
        kernel,
        out_shape=jax.ShapeDtypeStruct((n_shards * 8, C), jnp.float32),
        grid_spec=pltpu.PrefetchScalarGridSpec(
            num_scalar_prefetch=0,
            grid=(n_shards, tiles_per_shard),
            in_specs=[
                pl.BlockSpec((tile_b, C), data_map),   # predict tile
                pl.BlockSpec((tile_b, C), data_map),   # label tile
            ],
            # Output block doubles as the (8, C) accumulator, resident across
            # the reduction axis.
            out_specs=pl.BlockSpec((8, C), lambda i, j: (i, 0)),
        ),
        compiler_params=pltpu.CompilerParams(
            dimension_semantics=dim_sem,
            vmem_limit_bytes=vmem_limit,
        ),
    )(predict, label)

    # Weight applied once, outside the kernel, on per-column partial sums.
    total = jnp.sum(weight * partials)
    return total / jnp.float32(B * C)


# --------------------------------------------------------------------------
# Demo / self-test
# --------------------------------------------------------------------------
if __name__ == "__main__":
    key = jax.random.PRNGKey(0)
    k_w, k_p, k_l = jax.random.split(key, 3)

    B, C = 50, 96  # small, deliberately not tile-aligned
    weight = jax.random.uniform(k_w, (C,), jnp.float32)     # __init__ weight
    predict = jax.random.normal(k_p, (B, C), jnp.float32)
    label = jax.random.normal(k_l, (B, C), jnp.float32)

    # Pure-JAX reference (mirrors the PyTorch forward exactly).
    ref = jnp.mean(weight.reshape(1, C) * (predict - label) ** 2)

    # 1) Default auto-sized tiling (single tile, masked tail rows).
    loss = jax.block_until_ready(weighted_mse(weight, predict, label))
    assert jnp.allclose(loss, ref, rtol=1e-5, atol=1e-6), (loss, ref)

    # 2) Small tiles + 2 shards to exercise multi-tile, multi-shard and masking.
    loss2 = jax.block_until_ready(
        weighted_mse(weight, predict, label, tile_b=16, n_shards=2))
    assert jnp.allclose(loss2, ref, rtol=1e-5, atol=1e-6), (loss2, ref)

    # 3) Native bf16 inputs stay bf16 in HBM; upcast happens in-register.
    p_bf = predict.astype(jnp.bfloat16)
    l_bf = label.astype(jnp.bfloat16)
    ref_bf = jnp.mean(weight.reshape(1, C)
                      * (p_bf.astype(jnp.float32) - l_bf.astype(jnp.float32)) ** 2)
    loss3 = jax.block_until_ready(weighted_mse(weight, p_bf, l_bf))
    assert jnp.allclose(loss3, ref_bf, rtol=1e-4, atol=1e-5), (loss3, ref_bf)

    print("KERNEL_OK")
</pallas_src>

<mosaic_0001>
module attributes {stable_mosaic.version = 11 : i64} {
  func.func @_wmse_kernel(%arg0: i32, %arg1: i32, %arg2: memref<64x96xf32, #tpu.memory_space<vmem>>, %arg3: memref<64x96xf32, #tpu.memory_space<vmem>>, %arg4: memref<8x96xf32, #tpu.memory_space<vmem>>) attributes {dimension_semantics = [#tpu.dimension_semantics<parallel>, #tpu.dimension_semantics<arbitrary>], iteration_bounds = array<i64: 1, 1>, scalar_prefetch = 0 : i64, scratch_operands = 0 : i64, tpu.core_type = #tpu.core_type<tc>, window_params = [{transform_indices = @transform_0, window_bounds = array<i64: 64, 96>}, {transform_indices = @transform_1, window_bounds = array<i64: 64, 96>}, {transform_indices = @transform_2, window_bounds = array<i64: 8, 96>}]} {
    %c0_i32 = arith.constant 0 : i32
    %0 = arith.cmpi eq, %arg1, %c0_i32 : i32
    %1 = arith.extui %0 : i1 to i32
    %c0_i32_0 = arith.constant 0 : i32
    %2 = arith.cmpi ne, %1, %c0_i32_0 : i32
    scf.if %2 {
      %cst = arith.constant 0.000000e+00 : f32
      %13 = vector.broadcast %cst : f32 to vector<8x96xf32>
      %c0 = arith.constant 0 : index
      %c0_4 = arith.constant 0 : index
      %14 = vector.load %arg4[%c0, %c0_4] : memref<8x96xf32, #tpu.memory_space<vmem>>, vector<8x96xf32>
      tpu.vector_store %arg4[%c0, %c0_4], %13 {strides = array<i32>} : memref<8x96xf32, #tpu.memory_space<vmem>>, vector<8x96xf32>,
    } else {
    }
    %c1_i32 = arith.constant 1 : i32
    %3 = arith.muli %arg0, %c1_i32 : i32
    %4 = arith.addi %3, %arg1 : i32
    %c64_i32 = arith.constant 64 : i32
    %5 = arith.muli %4, %c64_i32 : i32
    %c50_i32 = arith.constant 50 : i32
    %6 = arith.subi %c50_i32, %5 : i32
    %c64_i32_1 = arith.constant 64 : i32
    %7 = arith.cmpi sge, %6, %c64_i32_1 : i32
    %8 = arith.extui %7 : i1 to i32
    %c0_i32_2 = arith.constant 0 : i32
    %9 = arith.cmpi ne, %8, %c0_i32_2 : i32
    scf.if %9 {
      %c0 = arith.constant 0 : index
      %c0_4 = arith.constant 0 : index
      %13 = vector.load %arg4[%c0, %c0_4] : memref<8x96xf32, #tpu.memory_space<vmem>>, vector<8x96xf32>
      %c0_5 = arith.constant 0 : index
      %c0_6 = arith.constant 0 : index
      %14 = vector.load %arg2[%c0_5, %c0_6] : memref<64x96xf32, #tpu.memory_space<vmem>>, vector<64x96xf32>
      %c0_7 = arith.constant 0 : index
      %c0_8 = arith.constant 0 : index
      %15 = vector.load %arg3[%c0_7, %c0_8] : memref<64x96xf32, #tpu.memory_space<vmem>>, vector<64x96xf32>
      %16 = arith.subf %14, %15 : vector<64x96xf32>
      %17 = arith.mulf %16, %16 : vector<64x96xf32>
      %18 = vector.extract_strided_slice %17 {offsets = [0, 0], sizes = [32, 96], strides = [1, 1]} : vector<64x96xf32> to vector<32x96xf32>
      %19 = vector.extract_strided_slice %17 {offsets = [32, 0], sizes = [32, 96], strides = [1, 1]} : vector<64x96xf32> to vector<32x96xf32>
      %20 = arith.addf %18, %19 : vector<32x96xf32>
      %21 = vector.extract_strided_slice %20 {offsets = [0, 0], sizes = [16, 96], strides = [1, 1]} : vector<32x96xf32> to vector<16x96xf32>
      %22 = vector.extract_strided_slice %20 {offsets = [16, 0], sizes = [16, 96], strides = [1, 1]} : vector<32x96xf32> to vector<16x96xf32>
      %23 = arith.addf %21, %22 : vector<16x96xf32>
      %24 = vector.extract_strided_slice %23 {offsets = [0, 0], sizes = [8, 96], strides = [1, 1]} : vector<16x96xf32> to vector<8x96xf32>
      %25 = vector.extract_strided_slice %23 {offsets = [8, 0], sizes = [8, 96], strides = [1, 1]} : vector<16x96xf32> to vector<8x96xf32>
      %26 = arith.addf %24, %25 : vector<8x96xf32>
      %27 = arith.addf %13, %26 : vector<8x96xf32>
      %c0_9 = arith.constant 0 : index
      %c0_10 = arith.constant 0 : index
      %28 = vector.load %arg4[%c0_9, %c0_10] : memref<8x96xf32, #tpu.memory_space<vmem>>, vector<8x96xf32>
      tpu.vector_store %arg4[%c0_9, %c0_10], %27 {strides = array<i32>} : memref<8x96xf32, #tpu.memory_space<vmem>>, vector<8x96xf32>,
    } else {
    }
    %true = arith.constant true
    %10 = arith.xori %7, %true : i1
    %11 = arith.extui %10 : i1 to i32
    %c0_i32_3 = arith.constant 0 : i32
    %12 = arith.cmpi ne, %11, %c0_i32_3 : i32
    scf.if %12 {
      %c0 = arith.constant 0 : index
      %c0_4 = arith.constant 0 : index
      %13 = vector.load %arg4[%c0, %c0_4] : memref<8x96xf32, #tpu.memory_space<vmem>>, vector<8x96xf32>
      %c0_5 = arith.constant 0 : index
      %c0_6 = arith.constant 0 : index
      %14 = vector.load %arg2[%c0_5, %c0_6] : memref<64x96xf32, #tpu.memory_space<vmem>>, vector<64x96xf32>
      %c0_7 = arith.constant 0 : index
      %c0_8 = arith.constant 0 : index
      %15 = vector.load %arg3[%c0_7, %c0_8] : memref<64x96xf32, #tpu.memory_space<vmem>>, vector<64x96xf32>
      %16 = arith.subf %14, %15 : vector<64x96xf32>
      %17 = arith.mulf %16, %16 : vector<64x96xf32>
      %18 = tpu.iota {dimensions = array<i32: 0>} : vector<64x96xi32>
      %19 = vector.broadcast %6 : i32 to vector<64x96xi32>
      %20 = arith.cmpi slt, %18, %19 : vector<64x96xi32>
      %cst = arith.constant 0.000000e+00 : f32
      %21 = vector.broadcast %cst : f32 to vector<64x96xf32>
      %22 = arith.select %20, %17, %21 : vector<64x96xi1>, vector<64x96xf32>
      %23 = vector.extract_strided_slice %22 {offsets = [0, 0], sizes = [32, 96], strides = [1, 1]} : vector<64x96xf32> to vector<32x96xf32>
      %24 = vector.extract_strided_slice %22 {offsets = [32, 0], sizes = [32, 96], strides = [1, 1]} : vector<64x96xf32> to vector<32x96xf32>
      %25 = arith.addf %23, %24 : vector<32x96xf32>
      %26 = vector.extract_strided_slice %25 {offsets = [0, 0], sizes = [16, 96], strides = [1, 1]} : vector<32x96xf32> to vector<16x96xf32>
      %27 = vector.extract_strided_slice %25 {offsets = [16, 0], sizes = [16, 96], strides = [1, 1]} : vector<32x96xf32> to vector<16x96xf32>
      %28 = arith.addf %26, %27 : vector<16x96xf32>
      %29 = vector.extract_strided_slice %28 {offsets = [0, 0], sizes = [8, 96], strides = [1, 1]} : vector<16x96xf32> to vector<8x96xf32>
      %30 = vector.extract_strided_slice %28 {offsets = [8, 0], sizes = [8, 96], strides = [1, 1]} : vector<16x96xf32> to vector<8x96xf32>
      %31 = arith.addf %29, %30 : vector<8x96xf32>
      %32 = arith.addf %13, %31 : vector<8x96xf32>
      %c0_9 = arith.constant 0 : index
      %c0_10 = arith.constant 0 : index
      %33 = vector.load %arg4[%c0_9, %c0_10] : memref<8x96xf32, #tpu.memory_space<vmem>>, vector<8x96xf32>
      tpu.vector_store %arg4[%c0_9, %c0_10], %32 {strides = array<i32>} : memref<8x96xf32, #tpu.memory_space<vmem>>, vector<8x96xf32>,
    } else {
    }
    return
  }
  func.func @transform_0(%arg0: i32, %arg1: i32) -> (i32, i32) {
    %c1_i32 = arith.constant 1 : i32
    %0 = arith.muli %arg0, %c1_i32 : i32
    %1 = arith.addi %0, %arg1 : i32
    %c0_i32 = arith.constant 0 : i32
    %2 = arith.minsi %1, %c0_i32 : i32
    %c0_i32_0 = arith.constant 0 : i32
    %c0_i32_1 = arith.constant 0 : i32
    return %2, %c0_i32_0 : i32, i32
  }
  func.func @transform_1(%arg0: i32, %arg1: i32) -> (i32, i32) {
    %c1_i32 = arith.constant 1 : i32
    %0 = arith.muli %arg0, %c1_i32 : i32
    %1 = arith.addi %0, %arg1 : i32
    %c0_i32 = arith.constant 0 : i32
    %2 = arith.minsi %1, %c0_i32 : i32
    %c0_i32_0 = arith.constant 0 : i32
    %c0_i32_1 = arith.constant 0 : i32
    return %2, %c0_i32_0 : i32, i32
  }
  func.func @transform_2(%arg0: i32, %arg1: i32) -> (i32, i32) {
    %c0_i32 = arith.constant 0 : i32
    %c0_i32_0 = arith.constant 0 : i32
    return %arg0, %c0_i32 : i32, i32
  }
}

</mosaic_0001>

<llo_original>
// kernel: tpu_custom_call.1
$region0: #{tpu_custom_call.1}
  #allocation0 [shape = 'u32[]', space=smem, size = 0x4, offset = 0x4, fixed_abs, tag = 'smem constant byte address 0x4 - core index']
  #allocation1 [shape = 'u32[72,128]{1,0:T(1,128)}', space=vmem, size = 0x9000, scoped, tag = 'internal scratch']
  %s0 = inlined_call_operand.hbm [shape: f32[50,96], index: 0, kind: input, shape index: {}]
  %s1 = inlined_call_operand.hbm [shape: f32[50,96], index: 1, kind: input, shape index: {}]
  %s2 = inlined_call_operand.hbm [shape: f32[8,96], index: 2, kind: output, shape index: {}]
  %s3 = sld [smem:[#allocation0]]
  $region38: #{tpu_custom_call.1} parent=0
    _
  %s5 = ssub.s32 1, %s3
  %s6 = scalar_select 0, %s5, %s3
  $region1: #{tpu_custom_call.1} parent=0
    #allocation2 [shape = 'u8[32768]{0}', space=vmem, size = 0x8000, scoped, tag = 'input window, operand 0, single buffered']
    #allocation3 [shape = 's32[1]{0}', space=sflag, size = 0x4, scoped, tag = 'scoped memory for tpu_custom_call.1']
    #allocation4 [shape = 's32[1]{0}', space=sflag, size = 0x4, scoped, tag = 'scoped memory for tpu_custom_call.1']
    #allocation5 [shape = 'u8[32768]{0}', space=vmem, size = 0x8000, scoped, tag = 'input window, operand 1, single buffered']
    #allocation6 [shape = 's32[1]{0}', space=sflag, size = 0x4, scoped, tag = 'scoped memory for tpu_custom_call.1']
    #allocation7 [shape = 'u8[4096]{0}', space=vmem, size = 0x1000, scoped, tag = 'output window, operand 0, single buffered']
    %7 = vsyncpa [#allocation3], 0
    %8 = vsyncpa [#allocation6], 0
    %9 = vsyncpa [#allocation4], 0
    // Predicated region
    $region2: #{tpu_custom_call.1} parent=1 // pred_check
      _
    $region3: #{tpu_custom_call.1} parent=1 // pred_check_branch
      %11 = sbr.rel (0) target = $region5
    $region4: #{tpu_custom_call.1} parent=1 // pred_region
      %s12 = sadd.s32 0, 0
      %p13 = scmp.lt.s32.totalorder %s12, 0
      %s14 = scalar_select %p13, %s12, 0
      %s15 = smul.u32 8, %s14
      %s16 = ssub.s32 7, %s15
      %s17 = smul.u32 8, %s16
      %s18 = ssub.s32 64, %s17
      %s19 = sshll.u32 %s18, 4
      %20 = vsyncadd [#allocation3], %s19
      %p21 = scmp.ne.s32.totalorder 0, %s17
      %s22 = smul.addr %s15, 8
      %s23 = scalar_lea.hbm %s0, %s22
      %s24 = smul.u32 8, %s16
      %s25 = sshll.u32 %s23, 4
      %s26 = int_to_ptr.hbm [resolvable:$true] %s25
      %s27 = sshll.u32 [#allocation2], 4
      %s28 = int_to_ptr.vmem [resolvable:$true] %s27
      %s29 = sshll.u32 %s24, 4
      %33 = dma.hbm_to_vmem [thread:$0]  (%p21), %s26, %s29, %s28, [#allocation3], 128, 128, 8
    $region5: #{tpu_custom_call.1} parent=1 // pred_fallthru
      _
    // Predicated region
    $region6: #{tpu_custom_call.1} parent=1 // pred_check
      _
    $region7: #{tpu_custom_call.1} parent=1 // pred_check_branch
      %35 = sbr.rel (0) target = $region9
    $region8: #{tpu_custom_call.1} parent=1 // pred_region
      %s36 = sadd.s32 0, 0
      %p37 = scmp.lt.s32.totalorder %s36, 0
      %s38 = scalar_select %p37, %s36, 0
      %s39 = smul.u32 8, %s38
      %s40 = ssub.s32 7, %s39
      %s41 = smul.u32 8, %s40
      %s42 = ssub.s32 64, %s41
      %s43 = sshll.u32 %s42, 4
      %44 = vsyncadd [#allocation6], %s43
      %p45 = scmp.ne.s32.totalorder 0, %s41
      %s46 = smul.addr %s39, 8
      %s47 = scalar_lea.hbm %s1, %s46
      %s48 = smul.u32 8, %s40
      %s49 = sshll.u32 %s47, 4
      %s50 = int_to_ptr.hbm [resolvable:$true] %s49
      %s51 = sshll.u32 [#allocation5], 4
      %s52 = int_to_ptr.vmem [resolvable:$true] %s51
      %s53 = sshll.u32 %s48, 4
      %57 = dma.hbm_to_vmem [thread:$0]  (%p45), %s50, %s53, %s52, [#allocation6], 128, 128, 8
    $region9: #{tpu_custom_call.1} parent=1 // pred_fallthru
      _
    // Predicated region
    $region10: #{tpu_custom_call.1} parent=1 // pred_check
      _
    $region11: #{tpu_custom_call.1} parent=1 // pred_check_branch
      %59 = sbr.rel (0) target = $region13
    $region12: #{tpu_custom_call.1} parent=1 // pred_region
      %61 = dma.done [#allocation3], 1024
    $region13: #{tpu_custom_call.1} parent=1 // pred_fallthru
      _
    // Predicated region
    $region14: #{tpu_custom_call.1} parent=1 // pred_check
      _
    $region15: #{tpu_custom_call.1} parent=1 // pred_check_branch
      %63 = sbr.rel (0) target = $region17
    $region16: #{tpu_custom_call.1} parent=1 // pred_region
      %65 = dma.done [#allocation6], 1024
    $region17: #{tpu_custom_call.1} parent=1 // pred_fallthru
      _
    %s66 = sadd.s32 0, 0
    %p67 = scmp.lt.s32.totalorder %s66, 0
    %s68 = scalar_select %p67, %s66, 0
    %s69 = smul.u32 8, %s68
    %s70 = ssub.s32 7, %s69
    %s71 = smul.u32 8, %s70
    %s72 = sadd.s32 0, 0
    %p73 = scmp.lt.s32.totalorder %s72, 0
    %s74 = scalar_select %p73, %s72, 0
    %s75 = smul.u32 8, %s74
    %s76 = ssub.s32 7, %s75
    %s77 = smul.u32 8, %s76
    %p78 = scmp.eq.s32.totalorder 0, 0
    // Predicated region
    $region18: #{tpu_custom_call.1} parent=1 // pred_check
      %p79 = pneg %p78
    $region19: #{tpu_custom_call.1} parent=1 // pred_check_branch
      %81 = sbr.rel (%p79) target = $region21
    $region20: #{tpu_custom_call.1} parent=1 // pred_region
      %vm82 = vcmask 785408
      %83 = vst.msk [vmem:[#allocation7] sm:$0xff] %vm82, 0.0
    $region21: #{tpu_custom_call.1} parent=1 // pred_fallthru
      _
    %s84 = sadd.s32 0, 0
    %s85 = smul.u32 %s84, 64
    %s86 = ssub.s32 50, %s85
    %p87 = scmp.ge.s32.totalorder %s86, 64
    // Predicated region
    $region22: #{tpu_custom_call.1} parent=1 // pred_check
      %p88 = pneg %p87
    $region23: #{tpu_custom_call.1} parent=1 // pred_check_branch
      %90 = sbr.rel (%p88) target = $region25
    $region24: #{tpu_custom_call.1} parent=1 // pred_region
      %v91 = vld [vmem:[#allocation7] sm:$0xff]
      %v92 = vld [vmem:[#allocation2] sm:$0xff]
      %v93 = vld [vmem:[#allocation2 + $0x8] sm:$0xff]
      %v94 = vld [vmem:[#allocation2 + $0x10] sm:$0xff]
      %v95 = vld [vmem:[#allocation2 + $0x18] sm:$0xff]
      %v96 = vld [vmem:[#allocation2 + $0x20] sm:$0xff]
      %v97 = vld [vmem:[#allocation2 + $0x28] sm:$0xff]
      %v98 = vld [vmem:[#allocation2 + $0x30] sm:$0xff]
      %v99 = vld [vmem:[#allocation2 + $0x38] sm:$0xff]
      %v100 = vld [vmem:[#allocation5] sm:$0xff]
      %v101 = vld [vmem:[#allocation5 + $0x8] sm:$0xff]
      %v102 = vld [vmem:[#allocation5 + $0x10] sm:$0xff]
      %v103 = vld [vmem:[#allocation5 + $0x18] sm:$0xff]
      %v104 = vld [vmem:[#allocation5 + $0x20] sm:$0xff]
      %v105 = vld [vmem:[#allocation5 + $0x28] sm:$0xff]
      %v106 = vld [vmem:[#allocation5 + $0x30] sm:$0xff]
      %v107 = vld [vmem:[#allocation5 + $0x38] sm:$0xff]
      %v108 = vsub.f32 %v92, %v100
      %v109 = vsub.f32 %v93, %v101
      %v110 = vsub.f32 %v94, %v102
      %v111 = vsub.f32 %v95, %v103
      %v112 = vsub.f32 %v96, %v104
      %v113 = vsub.f32 %v97, %v105
      %v114 = vsub.f32 %v98, %v106
      %v115 = vsub.f32 %v99, %v107
      %v116 = vmul.f32 %v108, %v108
      %v117 = vmul.f32 %v109, %v109
      %v118 = vmul.f32 %v110, %v110
      %v119 = vmul.f32 %v111, %v111
      %v120 = vmul.f32 %v112, %v112
      %v121 = vmul.f32 %v113, %v113
      %v122 = vmul.f32 %v114, %v114
      %v123 = vmul.f32 %v115, %v115
      %v124 = vadd.f32 %v116, %v120
      %v125 = vadd.f32 %v117, %v121
      %v126 = vadd.f32 %v118, %v122
      %v127 = vadd.f32 %v119, %v123
      %v128 = vadd.f32 %v124, %v126
      %v129 = vadd.f32 %v125, %v127
      %v130 = vadd.f32 %v128, %v129
      %v131 = vadd.f32 %v91, %v130
      %vm132 = vcmask 785408
      %133 = vst.msk [vmem:[#allocation7] sm:$0xff] %vm132, %v131
    $region25: #{tpu_custom_call.1} parent=1 // pred_fallthru
      _
    %p134 = scmp.lt.s32.totalorder %s86, 64
    // Predicated region
    $region26: #{tpu_custom_call.1} parent=1 // pred_check
      %p135 = pneg %p134
    $region27: #{tpu_custom_call.1} parent=1 // pred_check_branch
      %137 = sbr.rel (%p135) target = $region29
    $region28: #{tpu_custom_call.1} parent=1 // pred_region
      %v138 = vld [vmem:[#allocation7] sm:$0xff]
      %v139 = vld [vmem:[#allocation2] sm:$0xff]
      %v140 = vld [vmem:[#allocation2 + $0x8] sm:$0xff]
      %v141 = vld [vmem:[#allocation2 + $0x10] sm:$0xff]
      %v142 = vld [vmem:[#allocation2 + $0x18] sm:$0xff]
      %v143 = vld [vmem:[#allocation2 + $0x20] sm:$0xff]
      %v144 = vld [vmem:[#allocation2 + $0x28] sm:$0xff]
      %v145 = vld [vmem:[#allocation2 + $0x30] sm:$0xff]
      %v146 = vld [vmem:[#allocation2 + $0x38] sm:$0xff]
      %v147 = vld [vmem:[#allocation5] sm:$0xff]
      %v148 = vld [vmem:[#allocation5 + $0x8] sm:$0xff]
      %v149 = vld [vmem:[#allocation5 + $0x10] sm:$0xff]
      %v150 = vld [vmem:[#allocation5 + $0x18] sm:$0xff]
      %v151 = vld [vmem:[#allocation5 + $0x20] sm:$0xff]
      %v152 = vld [vmem:[#allocation5 + $0x28] sm:$0xff]
      %v153 = vld [vmem:[#allocation5 + $0x30] sm:$0xff]
      %v154 = vld [vmem:[#allocation5 + $0x38] sm:$0xff]
      %v155 = vsub.f32 %v139, %v147
      %v156 = vsub.f32 %v140, %v148
      %v157 = vsub.f32 %v141, %v149
      %v158 = vsub.f32 %v142, %v150
      %v159 = vsub.f32 %v143, %v151
      %v160 = vsub.f32 %v144, %v152
      %v161 = vsub.f32 %v145, %v153
      %v162 = vsub.f32 %v146, %v154
      %v163 = vmul.f32 %v155, %v155
      %v164 = vmul.f32 %v156, %v156
      %v165 = vmul.f32 %v157, %v157
      %v166 = vmul.f32 %v158, %v158
      %v167 = vmul.f32 %v159, %v159
      %v168 = vmul.f32 %v160, %v160
      %v169 = vmul.f32 %v161, %v161
      %v170 = vmul.f32 %v162, %v162
      %v171 = vlaneseq
      %v172 = vshrl.u32 %v171, 7
      %v173 = vadd.s32 %v172, 8
      %v174 = vadd.s32 %v172, 16
      %v175 = vadd.s32 %v172, 24
      %v176 = vadd.s32 %v172, 32
      %v177 = vadd.s32 %v172, 40
      %v178 = vadd.s32 %v172, 48
      %v179 = vadd.s32 %v172, 56
      %v180 = vstv %s86
      %vm181 = vcmp.lt.s32.totalorder %v172, %v180
      %vm182 = vcmp.lt.s32.totalorder %v173, %v180
      %vm183 = vcmp.lt.s32.totalorder %v174, %v180
      %vm184 = vcmp.lt.s32.totalorder %v175, %v180
      %vm185 = vcmp.lt.s32.totalorder %v176, %v180
      %vm186 = vcmp.lt.s32.totalorder %v177, %v180
      %vm187 = vcmp.lt.s32.totalorder %v178, %v180
      %vm188 = vcmp.lt.s32.totalorder %v179, %v180
      %v189 = vsel %vm181, %v163, 0.0
      %v190 = vsel %vm182, %v164, 0.0
      %v191 = vsel %vm183, %v165, 0.0
      %v192 = vsel %vm184, %v166, 0.0
      %v193 = vsel %vm185, %v167, 0.0
      %v194 = vsel %vm186, %v168, 0.0
      %v195 = vsel %vm187, %v169, 0.0
      %v196 = vsel %vm188, %v170, 0.0
      %v197 = vadd.f32 %v189, %v193
      %v198 = vadd.f32 %v190, %v194
      %v199 = vadd.f32 %v191, %v195
      %v200 = vadd.f32 %v192, %v196
      %v201 = vadd.f32 %v197, %v199
      %v202 = vadd.f32 %v198, %v200
      %v203 = vadd.f32 %v201, %v202
      %v204 = vadd.f32 %v138, %v203
      %vm205 = vcmask 785408
      %206 = vst.msk [vmem:[#allocation7] sm:$0xff] %vm205, %v204
    $region29: #{tpu_custom_call.1} parent=1 // pred_fallthru
      _
    // Predicated region
    $region30: #{tpu_custom_call.1} parent=1 // pred_check
      _
    $region31: #{tpu_custom_call.1} parent=1 // pred_check_branch
      %208 = sbr.rel (0) target = $region33
    $region32: #{tpu_custom_call.1} parent=1 // pred_region
      %210 = vsyncadd [#allocation4], 0
      %s212 = sshll.u32 [#allocation7], 4
      %s213 = int_to_ptr.vmem [resolvable:$true] %s212
      %s214 = sshll.u32 %s2, 4
      %s215 = int_to_ptr.hbm [resolvable:$true] %s214
      %217 = dma.vmem_to_hbm [thread:$0]  %s213, 128, %s215, [#allocation4]
    $region33: #{tpu_custom_call.1} parent=1 // pred_fallthru
      _
    // Predicated region
    $region34: #{tpu_custom_call.1} parent=1 // pred_check
      _
    $region35: #{tpu_custom_call.1} parent=1 // pred_check_branch
      %219 = sbr.rel (0) target = $region37
    $region36: #{tpu_custom_call.1} parent=1 // pred_region
      %221 = dma.done [#allocation4], 128
    $region37: #{tpu_custom_call.1} parent=1 // pred_fallthru
      _
    %222 = vsyncpa [#allocation3], 1
    %223 = vsyncpa [#allocation6], 1
    %224 = vsyncpa [#allocation4], 1

</llo_original>
